<compile_context>
chip_gen: v5e
topology: v5e:2x2
jax: 0.10.0
libtpu: 0.0.40
codegen_flags: <defaults>
</compile_context>

<pallas_src>
import jax
import jax.numpy as jnp
from jax.experimental import pallas as pl
from jax.experimental.pallas import tpu as pltpu


def _round_up(v, m):
    return ((v + m - 1) // m) * m


def _largest_tile(extent, max_tile, step):
    """Largest multiple of `step` that is <= max_tile and divides `extent`.
    `extent` must be a positive multiple of `step`."""
    t = min(max_tile, extent)
    t -= t % step
    while extent % t:
        t -= step
    return t


def _apply_activation(h, activation):
    if activation is None:
        return h
    if activation == "sigmoid":
        return jax.nn.sigmoid(h)
    if activation == "tanh":
        return jnp.tanh(h)
    if activation == "relu":
        return jnp.maximum(h, 0.0)
    if activation == "softplus":
        return jax.nn.softplus(h)
    raise ValueError(f"unsupported activation: {activation}")


def _make_kernel(activation, has_bias, single_k, acc_in_out):
    """Build the kernel body for one (activation, bias, K-blocks, acc) config."""

    def kernel(*refs):
        x_ref, w_ref = refs[0], refs[1]
        idx = 2
        b_ref = None
        if has_bias:
            b_ref = refs[idx]
            idx += 1
        o_ref = refs[idx]
        idx += 1
        acc_ref = refs[idx] if idx < len(refs) else None

        def epilogue(h):
            if b_ref is not None:
                h = h + b_ref[...]                    # (1, tn) f32 broadcast
            h = _apply_activation(h, activation)       # f32 epilogue (v5e-safe)
            return h.astype(o_ref.dtype)

        if single_k:
            # Single K block: no init / read-modify-write needed.
            h = jnp.dot(x_ref[...], w_ref[...],
                        preferred_element_type=jnp.float32)
            o_ref[...] = epilogue(h)
            return

        # Multi-K: accumulate either directly in the resident f32 output block
        # or in a dedicated f32 VMEM scratch (non-f32 output dtypes).
        acc = o_ref if acc_in_out else acc_ref
        k = pl.program_id(2)

        @pl.when(k == 0)
        def _init():
            acc[...] = jnp.zeros_like(acc)

        acc[...] += jnp.dot(x_ref[...], w_ref[...],
                            preferred_element_type=jnp.float32)

        @pl.when(k == pl.num_programs(2) - 1)
        def _finalize():
            o_ref[...] = epilogue(acc[...])

    return kernel


def prepare_params(weight, bias=None, *, compute_dtype=jnp.bfloat16):
    """One-time parameter prep, hoisted out of the forward hot path.

    weight: (N, K) in PyTorch nn.Linear (out, in) layout.
    Returns (w_kn, b_row, n_out):
      w_kn : (Kp, Np) weight, transposed to (K, N), zero-padded to multiples
             of 128 and cast to compute_dtype (MXU-native layout).
      b_row: (1, Np) f32 bias row (or None).
      n_out: logical output feature count (for slicing).
    """
    weight = jnp.asarray(weight)
    N, K = weight.shape
    Kp, Np = _round_up(K, 128), _round_up(N, 128)
    w_kn = weight.T                                  # (K, N)
    if (K, N) != (Kp, Np):
        w_kn = jnp.pad(w_kn, ((0, Kp - K), (0, Np - N)))
    w_kn = w_kn.astype(compute_dtype)
    b_row = None
    if bias is not None:
        b_row = jnp.asarray(bias, jnp.float32).reshape(1, N)
        if N != Np:
            b_row = jnp.pad(b_row, ((0, 0), (0, Np - N)))
    return w_kn, b_row, N


def nonlinear_prepared(x, w_kn, b_row, n_out, activation=None, *,
                       compute_dtype=jnp.bfloat16, tm=512, tn=512, tk=512):
    """Hot path: y = activation(x @ W.T + b) with pre-prepared parameters."""
    orig_shape = x.shape
    if x.ndim != 2:
        x = x.reshape(-1, orig_shape[-1])
    M, K = x.shape
    Kp, Np = w_kn.shape
    assert K <= Kp and Kp - K < 128, "x features inconsistent with prepared weight"

    out_dtype = x.dtype

    Mp = _round_up(M, 8)
    tm = _largest_tile(Mp, tm, 8)
    tk = _largest_tile(Kp, tk, 128)
    tn = _largest_tile(Np, tn, 128)

    # v7x has 2 TensorCores: make sure the parallel grid has >= 2 blocks
    # whenever the problem is splittable.
    if (Mp // tm) * (Np // tn) == 1:
        if tn >= 256:
            tn //= 2
        elif tm >= 16:
            tm //= 2

    xp = x.astype(compute_dtype)
    if (M, K) != (Mp, Kp):
        xp = jnp.pad(xp, ((0, Mp - M), (0, Kp - K)))

    grid = (Mp // tm, Np // tn, Kp // tk)
    single_k = grid[2] == 1
    acc_in_out = (out_dtype == jnp.float32) and not single_k
    use_scratch = (not single_k) and (not acc_in_out)
    has_bias = b_row is not None

    operands = [xp, w_kn]
    in_specs = [
        pl.BlockSpec((tm, tk), lambda i, j, k: (i, k)),   # x tile
        pl.BlockSpec((tk, tn), lambda i, j, k: (k, j)),   # weight tile, (K, N)
    ]
    if has_bias:
        operands.append(b_row)
        in_specs.append(pl.BlockSpec((1, tn), lambda i, j, k: (0, j)))

    scratch_shapes = [pltpu.VMEM((tm, tn), jnp.float32)] if use_scratch else []

    cbytes = jnp.dtype(compute_dtype).itemsize
    obytes = jnp.dtype(out_dtype).itemsize
    # Real HBM traffic, including re-streaming across non-contracting grid axes.
    bytes_accessed = (grid[1] * Mp * Kp * cbytes        # x read once per N block
                      + grid[0] * Kp * Np * cbytes      # w read once per M block
                      + Mp * Np * obytes                 # output write
                      + (grid[0] * Np * 4 if has_bias else 0))
    cost = pl.CostEstimate(
        flops=2 * Mp * Np * Kp,
        transcendentals=(Mp * Np
                         if activation in ("sigmoid", "tanh", "softplus") else 0),
        bytes_accessed=bytes_accessed)

    # Double-buffered working set + headroom; capped well under v7x's 64 MiB.
    footprint = (2 * (tm * tk + tk * tn) * cbytes
                 + 2 * tm * tn * obytes
                 + (tm * tn * 4 if use_scratch else 0)
                 + (2 * tn * 4 if has_bias else 0))
    vmem_limit = min(max(footprint + (8 << 20), 16 << 20), 40 << 20)

    kernel = _make_kernel(activation, has_bias, single_k, acc_in_out)

    out_padded = pl.pallas_call(
        kernel,
        out_shape=jax.ShapeDtypeStruct((Mp, Np), out_dtype),
        grid_spec=pltpu.PrefetchScalarGridSpec(
            num_scalar_prefetch=0,
            grid=grid,
            in_specs=in_specs,
            out_specs=pl.BlockSpec((tm, tn), lambda i, j, k: (i, j)),
            scratch_shapes=scratch_shapes,
        ),
        compiler_params=pltpu.CompilerParams(
            dimension_semantics=("parallel", "parallel", "arbitrary"),
            vmem_limit_bytes=vmem_limit),
        cost_estimate=cost,
    )(*operands)

    out = out_padded[:M, :n_out]
    if len(orig_shape) != 2:
        out = out.reshape(orig_shape[:-1] + (n_out,))
    return out


def nonlinear(x, weight, bias=None, activation=None, *,
              compute_dtype=jnp.bfloat16, use_pallas=None, **tile_kwargs):
    """One-shot convenience wrapper (pads/casts params per call).

    For repeated forward calls, use NonLinearPallas / prepare_params so the
    parameter padding/transpose/cast is done once, not per invocation.
    """
    N, K = weight.shape
    M = x.size // x.shape[-1]
    if use_pallas is None:
        # Tiny layers: pad + pallas_call + slice overhead dwarfs the matmul.
        use_pallas = (M * N * K) >= (1 << 20)
    if not use_pallas:
        h = jnp.dot(x, jnp.asarray(weight).T)
        if bias is not None:
            h = h + bias
        return _apply_activation(h, activation).astype(x.dtype)
    w_kn, b_row, n_out = prepare_params(weight, bias, compute_dtype=compute_dtype)
    return nonlinear_prepared(x, w_kn, b_row, n_out, activation,
                              compute_dtype=compute_dtype, **tile_kwargs)


class NonLinearPallas:
    """Pallas equivalent of BioBatchNet NonLinear: Linear + optional activation.

    Parameter layout work (transpose/pad/cast) is hoisted into __init__ so the
    per-call forward only pads the activations and runs the kernel.
    """

    def __init__(self, weight, bias=None, activation=None,
                 compute_dtype=jnp.bfloat16):
        self.activation = activation
        self.compute_dtype = compute_dtype
        self.w_kn, self.b_row, self.n_out = prepare_params(
            weight, bias, compute_dtype=compute_dtype)

    def __call__(self, x, **tile_kwargs):
        return nonlinear_prepared(x, self.w_kn, self.b_row, self.n_out,
                                  self.activation,
                                  compute_dtype=self.compute_dtype,
                                  **tile_kwargs)


def init_linear_params(key, in_features, out_features):
    """Deterministic nn.Linear-style init: U(-1/sqrt(in), 1/sqrt(in))."""
    kw, kb = jax.random.split(key)
    bound = 1.0 / jnp.sqrt(jnp.float32(in_features))
    weight = jax.random.uniform(
        kw, (out_features, in_features), jnp.float32, -bound, bound)
    bias = jax.random.uniform(
        kb, (out_features,), jnp.float32, -bound, bound)
    return weight, bias


if __name__ == "__main__":
    key = jax.random.PRNGKey(0)
    k_x, k_p = jax.random.split(key)

    batch, in_features, out_features = 8, 32, 64
    x = jax.random.normal(k_x, (batch, in_features), jnp.float32)
    weight, bias = init_linear_params(k_p, in_features, out_features)

    # NonLinear(input_size=32, output_size=64, bias=True, activation=Sigmoid)
    layer = NonLinearPallas(weight, bias, activation="sigmoid")
    out = jax.block_until_ready(layer(x))
    ref = jax.nn.sigmoid(x @ weight.T + bias)
    assert out.shape == (batch, out_features)
    assert jnp.allclose(out, ref, atol=2e-2, rtol=2e-2)

    # Bias-free, no-activation variant (pure Linear path), Pallas path forced
    # on so the single-K fast-path kernel is exercised at this tiny size too.
    out2 = jax.block_until_ready(
        nonlinear(x, weight, None, activation=None, use_pallas=True))
    assert jnp.allclose(out2, x @ weight.T, atol=2e-2, rtol=2e-2)

    # Larger shape exercising the multi-K-block accumulate-in-output path and
    # the 2-block parallel grid (both v7x TensorCores busy).
    k_x2, k_p2 = jax.random.split(jax.random.PRNGKey(1))
    x2 = jax.random.normal(k_x2, (256, 1024), jnp.float32)
    w2, b2 = init_linear_params(k_p2, 1024, 768)
    layer2 = NonLinearPallas(w2, b2, activation="relu")
    out3 = jax.block_until_ready(layer2(x2, tk=512))
    ref3 = jnp.maximum(x2 @ w2.T + b2, 0.0)
    assert jnp.allclose(out3, ref3, atol=0.2, rtol=5e-2)

    print("KERNEL_OK")
</pallas_src>

<mosaic_0001>
module attributes {stable_mosaic.version = 11 : i64} {
  func.func @kernel(%arg0: i32, %arg1: i32, %arg2: i32, %arg3: memref<8x128xbf16, #tpu.memory_space<vmem>>, %arg4: memref<128x128xbf16, #tpu.memory_space<vmem>>, %arg5: memref<1x128xf32, #tpu.memory_space<vmem>>, %arg6: memref<8x128xf32, #tpu.memory_space<vmem>>) attributes {dimension_semantics = [#tpu.dimension_semantics<parallel>, #tpu.dimension_semantics<parallel>, #tpu.dimension_semantics<arbitrary>], iteration_bounds = array<i64: 1, 1, 1>, scalar_prefetch = 0 : i64, scratch_operands = 0 : i64, tpu.core_type = #tpu.core_type<tc>, window_params = [{transform_indices = @transform_0, window_bounds = array<i64: 8, 128>}, {transform_indices = @transform_1, window_bounds = array<i64: 128, 128>}, {transform_indices = @transform_2, window_bounds = array<i64: 1, 128>}, {transform_indices = @transform_3, window_bounds = array<i64: 8, 128>}]} {
    %c0 = arith.constant 0 : index
    %c0_0 = arith.constant 0 : index
    %0 = vector.load %arg3[%c0, %c0_0] : memref<8x128xbf16, #tpu.memory_space<vmem>>, vector<8x128xbf16>
    %c0_1 = arith.constant 0 : index
    %c0_2 = arith.constant 0 : index
    %1 = vector.load %arg4[%c0_1, %c0_2] : memref<128x128xbf16, #tpu.memory_space<vmem>>, vector<128x128xbf16>
    %cst = arith.constant dense<0.000000e+00> : vector<8x128xf32>
    %2 = tpu.matmul %0, %1, %cst {dimension_numbers = #tpu.dot_dimension_numbers<[1], [0], [0], [1], [0, 0, 1, 1], [], []>} : vector<8x128xbf16>, vector<128x128xbf16>, vector<8x128xf32> -> vector<8x128xf32>
    %c0_3 = arith.constant 0 : index
    %c0_4 = arith.constant 0 : index
    %3 = vector.load %arg5[%c0_3, %c0_4] : memref<1x128xf32, #tpu.memory_space<vmem>>, vector<1x128xf32>
    %4 = vector.broadcast %3 : vector<1x128xf32> to vector<8x128xf32>
    %5 = arith.addf %2, %4 : vector<8x128xf32>
    %6 = arith.negf %5 : vector<8x128xf32>
    %7 = math.exp %6 : vector<8x128xf32>
    %cst_5 = arith.constant 1.000000e+00 : f32
    %8 = vector.broadcast %cst_5 : f32 to vector<8x128xf32>
    %9 = arith.addf %8, %7 : vector<8x128xf32>
    %10 = arith.divf %8, %9 : vector<8x128xf32>
    %c0_6 = arith.constant 0 : index
    %c0_7 = arith.constant 0 : index
    %11 = vector.load %arg6[%c0_6, %c0_7] : memref<8x128xf32, #tpu.memory_space<vmem>>, vector<8x128xf32>
    tpu.vector_store %arg6[%c0_6, %c0_7], %10 {strides = array<i32>} : memref<8x128xf32, #tpu.memory_space<vmem>>, vector<8x128xf32>,
    return
  }
  func.func @transform_0(%arg0: i32, %arg1: i32, %arg2: i32) -> (i32, i32) {
    %c0_i32 = arith.constant 0 : i32
    return %arg0, %arg2 : i32, i32
  }
  func.func @transform_1(%arg0: i32, %arg1: i32, %arg2: i32) -> (i32, i32) {
    %c0_i32 = arith.constant 0 : i32
    return %arg2, %arg1 : i32, i32
  }
  func.func @transform_2(%arg0: i32, %arg1: i32, %arg2: i32) -> (i32, i32) {
    %c0_i32 = arith.constant 0 : i32
    %c0_i32_0 = arith.constant 0 : i32
    return %c0_i32, %arg1 : i32, i32
  }
  func.func @transform_3(%arg0: i32, %arg1: i32, %arg2: i32) -> (i32, i32) {
    %c0_i32 = arith.constant 0 : i32
    return %arg0, %arg1 : i32, i32
  }
}

</mosaic_0001>

<llo_original>
// kernel: tpu_custom_call.1
$region0: #{tpu_custom_call.1}
  #allocation0 [shape = 'u32[]', space=smem, size = 0x4, offset = 0x4, fixed_abs, tag = 'smem constant byte address 0x4 - core index']
  #allocation1 [shape = 'u32[72,128]{1,0:T(1,128)}', space=vmem, size = 0x9000, scoped, tag = 'internal scratch']
  %s0 = inlined_call_operand.hbm [shape: bf16[8,128], index: 0, kind: input, shape index: {}]
  %s1 = inlined_call_operand.hbm [shape: bf16[128,128], index: 1, kind: input, shape index: {}]
  %s2 = inlined_call_operand.vmem [shape: f32[1,128], index: 2, kind: input, shape index: {}]
  %s3 = inlined_call_operand.hbm [shape: f32[8,128], index: 3, kind: output, shape index: {}]
  %s4 = sld [smem:[#allocation0]]
  $region30: #{tpu_custom_call.1} parent=0
    _
  %s6 = ssub.s32 1, %s4
  %s7 = scalar_select 0, %s6, %s4
  $region1: #{tpu_custom_call.1} parent=0
    #allocation2 [shape = 'u8[2048]{0}', space=vmem, size = 0x800, scoped, tag = 'input window, operand 0, single buffered']
    #allocation3 [shape = 's32[1]{0}', space=sflag, size = 0x4, scoped, tag = 'scoped memory for tpu_custom_call.1']
    #allocation4 [shape = 's32[1]{0}', space=sflag, size = 0x4, scoped, tag = 'scoped memory for tpu_custom_call.1']
    #allocation5 [shape = 'u8[32768]{0}', space=vmem, size = 0x8000, scoped, tag = 'input window, operand 1, single buffered']
    #allocation6 [shape = 's32[1]{0}', space=sflag, size = 0x4, scoped, tag = 'scoped memory for tpu_custom_call.1']
    #allocation7 [shape = 'u8[4096]{0}', space=vmem, size = 0x1000, scoped, tag = 'output window, operand 0, single buffered']
    %8 = vsyncpa [#allocation3], 0
    %9 = vsyncpa [#allocation6], 0
    %10 = vsyncpa [#allocation4], 0
    // Predicated region
    $region2: #{tpu_custom_call.1} parent=1 // pred_check
      _
    $region3: #{tpu_custom_call.1} parent=1 // pred_check_branch
      %12 = sbr.rel (0) target = $region5
    $region4: #{tpu_custom_call.1} parent=1 // pred_region
      %14 = vsyncadd [#allocation3], 0
      %s16 = sshll.u32 %s0, 4
      %s17 = int_to_ptr.hbm [resolvable:$true] %s16
      %s18 = sshll.u32 [#allocation2], 4
      %s19 = int_to_ptr.vmem [resolvable:$true] %s18
      %21 = dma.hbm_to_vmem [thread:$0]  %s17, 64, %s19, [#allocation3]
    $region5: #{tpu_custom_call.1} parent=1 // pred_fallthru
      _
    // Predicated region
    $region6: #{tpu_custom_call.1} parent=1 // pred_check
      _
    $region7: #{tpu_custom_call.1} parent=1 // pred_check_branch
      %23 = sbr.rel (0) target = $region9
    $region8: #{tpu_custom_call.1} parent=1 // pred_region
      %25 = vsyncadd [#allocation6], 0
      %s26 = sshll.u32 %s1, 4
      %s27 = int_to_ptr.hbm [resolvable:$true] %s26
      %s28 = sshll.u32 [#allocation5], 4
      %s29 = int_to_ptr.vmem [resolvable:$true] %s28
      %34 = dma.hbm_to_vmem [thread:$0]  %s27, 1024, %s29, [#allocation6], 64, 64, 4
    $region9: #{tpu_custom_call.1} parent=1 // pred_fallthru
      _
    // Predicated region
    $region10: #{tpu_custom_call.1} parent=1 // pred_check
      _
    $region11: #{tpu_custom_call.1} parent=1 // pred_check_branch
      %36 = sbr.rel (0) target = $region13
    $region12: #{tpu_custom_call.1} parent=1 // pred_region
      _
    $region13: #{tpu_custom_call.1} parent=1 // pred_fallthru
      _
    // Predicated region
    $region14: #{tpu_custom_call.1} parent=1 // pred_check
      _
    $region15: #{tpu_custom_call.1} parent=1 // pred_check_branch
      %38 = sbr.rel (0) target = $region17
    $region16: #{tpu_custom_call.1} parent=1 // pred_region
      %40 = dma.done [#allocation3], 64
    $region17: #{tpu_custom_call.1} parent=1 // pred_fallthru
      _
    // Predicated region
    $region18: #{tpu_custom_call.1} parent=1 // pred_check
      _
    $region19: #{tpu_custom_call.1} parent=1 // pred_check_branch
      %42 = sbr.rel (0) target = $region21
    $region20: #{tpu_custom_call.1} parent=1 // pred_region
      %44 = dma.done [#allocation6], 1024
    $region21: #{tpu_custom_call.1} parent=1 // pred_fallthru
      _
    %v45 = vld [vmem:[#allocation2] sm:$0xf]
    %v46 = vld [vmem:[#allocation5] sm:$0xf]
    %v47 = vld [vmem:[#allocation5 + $0x4] sm:$0xf]
    %v48 = vld [vmem:[#allocation5 + $0x8] sm:$0xf]
    %v49 = vld [vmem:[#allocation5 + $0xc] sm:$0xf]
    %v50 = vld [vmem:[#allocation5 + $0x10] sm:$0xf]
    %v51 = vld [vmem:[#allocation5 + $0x14] sm:$0xf]
    %v52 = vld [vmem:[#allocation5 + $0x18] sm:$0xf]
    %v53 = vld [vmem:[#allocation5 + $0x1c] sm:$0xf]
    %v54 = vld [vmem:[#allocation5 + $0x20] sm:$0xf]
    %v55 = vld [vmem:[#allocation5 + $0x24] sm:$0xf]
    %v56 = vld [vmem:[#allocation5 + $0x28] sm:$0xf]
    %v57 = vld [vmem:[#allocation5 + $0x2c] sm:$0xf]
    %v58 = vld [vmem:[#allocation5 + $0x30] sm:$0xf]
    %v59 = vld [vmem:[#allocation5 + $0x34] sm:$0xf]
    %v60 = vld [vmem:[#allocation5 + $0x38] sm:$0xf]
    %v61 = vld [vmem:[#allocation5 + $0x3c] sm:$0xf]
    %v62 = vld [vmem:[%s2] sm:$0x1]
    %v64 = vperm.slane %v62, 0
    %v82 = vunpack.c.l.b16 %v46
    %v83 = vunpack.c.l.b16 %v47
    %v84 = vunpack.c.l.b16 %v48
    %v85 = vunpack.c.l.b16 %v49
    %v86 = vunpack.c.l.b16 %v50
    %v87 = vunpack.c.l.b16 %v51
    %v88 = vunpack.c.l.b16 %v52
    %v89 = vunpack.c.l.b16 %v53
    %v90 = vunpack.c.l.b16 %v54
    %v91 = vunpack.c.l.b16 %v55
    %v92 = vunpack.c.l.b16 %v56
    %v93 = vunpack.c.l.b16 %v57
    %v94 = vunpack.c.l.b16 %v58
    %v95 = vunpack.c.l.b16 %v59
    %v96 = vunpack.c.l.b16 %v60
    %v97 = vunpack.c.l.b16 %v61
    %v98 = vpack.c.b16 %v83, %v82
    %v99 = vpack.c.b16 %v85, %v84
    %v100 = vpack.c.b16 %v87, %v86
    %v101 = vpack.c.b16 %v89, %v88
    %v102 = vpack.c.b16 %v91, %v90
    %v103 = vpack.c.b16 %v93, %v92
    %v104 = vpack.c.b16 %v95, %v94
    %v105 = vpack.c.b16 %v97, %v96
    %114 = vmatpush.bf16.msra.mxu0 %v105
    %115 = vmatpush.bf16.msra.mxu0 %v104
    %116 = vmatpush.bf16.msra.mxu0 %v103
    %117 = vmatpush.bf16.msra.mxu0 %v102
    %118 = vmatpush.bf16.msra.mxu0 %v101
    %119 = vmatpush.bf16.msra.mxu0 %v100
    %120 = vmatpush.bf16.msra.mxu0 %v99
    %121 = vmatpush.bf16.msra.mxu0 %v98
    %122 = vmatmul.bf16.gmra.mxu0 %v45
    %v123 = vpop.f32.mrf.mxu0
    %v124 = vadd.f32 %v64, %v123
    %v125 = vpop.f32.mrf.mxu0
    %126 = vdwg.mxu0
    %v127 = vxor.u32 %v124, 2147483648
    %v128 = vmul.f32 %v127, 1.442695
    %v129 = vpow.pop %v128
    %v130 = vadd.f32 %v129, 1.0
    %v131 = vrcp.pop %v130
    %v132 = vmul.f32 %v130, %v131
    %v133 = vsub.f32 1.0, %v132
    %v134 = vmul.f32 %v131, %v133
    %v135 = vadd.f32 %v131, %v134
    %vm136 = vweird.f32 %v130
    %vm137 = vweird.f32 %v131
    %vm138 = vmor %vm136, %vm137
    %v139 = vsel %vm138, %v131, %v135
    %v140 = vand.u32 2147483647, %v130
    %vm141 = vcmp.eq.f32.partialorder %v140, 8.507059e+37
    %v142 = vand.u32 %v130, 2147483648
    %v143 = vor.u32 1.1754944e-38, %v142
    %v144 = vsel %vm141, %v143, %v139
    %v145 = vmul.f32 1.0, %v144
    %146 = vst [vmem:[#allocation7] sm:$0xff] %v145
    // Predicated region
    $region22: #{tpu_custom_call.1} parent=1 // pred_check
      _
    $region23: #{tpu_custom_call.1} parent=1 // pred_check_branch
      %148 = sbr.rel (0) target = $region25
    $region24: #{tpu_custom_call.1} parent=1 // pred_region
      %150 = vsyncadd [#allocation4], 0
      %s152 = sshll.u32 [#allocation7], 4
      %s153 = int_to_ptr.vmem [resolvable:$true] %s152
      %s154 = sshll.u32 %s3, 4
      %s155 = int_to_ptr.hbm [resolvable:$true] %s154
      %157 = dma.vmem_to_hbm [thread:$0]  %s153, 128, %s155, [#allocation4]
    $region25: #{tpu_custom_call.1} parent=1 // pred_fallthru
      _
    // Predicated region
    $region26: #{tpu_custom_call.1} parent=1 // pred_check
      _
    $region27: #{tpu_custom_call.1} parent=1 // pred_check_branch
      %159 = sbr.rel (0) target = $region29
    $region28: #{tpu_custom_call.1} parent=1 // pred_region
      %161 = dma.done [#allocation4], 128
    $region29: #{tpu_custom_call.1} parent=1 // pred_fallthru
      _
    %162 = vsyncpa [#allocation3], 1
    %163 = vsyncpa [#allocation6], 1
    %164 = vsyncpa [#allocation4], 1

</llo_original>
